<compile_context>
chip_gen: v7x
topology: tpu7x:2x2x1
jax: 0.10.0
libtpu: 0.0.40
codegen_flags: <defaults>
</compile_context>

<pallas_src>
import functools
import math

import numpy as np
import jax
import jax.numpy as jnp
from jax.experimental import pallas as pl
from jax.experimental.pallas import tpu as pltpu

BN_EPS = 1e-5
_LANE = 128      # lane width
_SUB = 8         # f32 sublane tile
_W_ALIGN = 16    # compute-width alignment (bf16 packed sublane tile)


def _round_up(x, m):
    return ((x + m - 1) // m) * m


def _pad_to(x, shape):
    pads = [(0, t - s) for s, t in zip(x.shape, shape)]
    if all(p == (0, 0) for p in pads):
        return x
    return jnp.pad(x, pads)


def _compiler_params(semantics, block_bytes):
    est = int(2 * block_bytes + (8 << 20))
    est = max(32 << 20, min(64 << 20, est))
    return pltpu.CompilerParams(dimension_semantics=semantics,
                                vmem_limit_bytes=est)


# ----------------------------------------------------------------------------
# General batched matmul + fused BN/ReLU, with K-reduction grid axis
# ----------------------------------------------------------------------------
def _mm_bn_act_kernel(x_ref, w_ref, scale_ref, shift_ref, o_ref, acc_ref, *, relu, nk):
    @pl.when(pl.program_id(3) == 0)
    def _init():
        acc_ref[...] = jnp.zeros_like(acc_ref)

    acc_ref[...] += jnp.dot(x_ref[...], w_ref[...],
                            preferred_element_type=jnp.float32)

    @pl.when(pl.program_id(3) == nk - 1)
    def _finish():
        y = acc_ref[...] * scale_ref[...] + shift_ref[...]
        if relu:
            y = jnp.maximum(y, 0.0)
        o_ref[...] = y.astype(o_ref.dtype)


def matmul_bn_act(x, w, scale, shift, *, relu, out_dtype=jnp.float32,
                  trim_cout=True, tm=256, tk=512, tn=256):
    """y[b] = act((x[b] @ w[b]) * scale[b] + shift[b]).

    x:(Bx,M,K)  w:(Bw,K,C)  scale/shift:(Bs,1,C).  Any batch dim may be 1
    (broadcast).  bf16 operands, f32 accumulation in a VMEM scratch, f32
    BN/ReLU epilogue.  M/K/C zero-padded to tile multiples; K is a reduction
    grid axis marked "arbitrary"."""
    x = x.astype(jnp.bfloat16)
    w = w.astype(jnp.bfloat16)
    scale = scale.astype(jnp.float32)
    shift = shift.astype(jnp.float32)

    Bx, M, K = x.shape
    Bw, Kw, C = w.shape
    assert K == Kw, (K, Kw)
    Bs, Bt = scale.shape[0], shift.shape[0]
    B = max(Bx, Bw, Bs, Bt)

    TM = min(_round_up(M, _SUB), _round_up(tm, _SUB))
    TK = min(_round_up(K, _LANE), _round_up(tk, _LANE))
    TN = min(_round_up(C, _LANE), _round_up(tn, _LANE))
    Mp, Kp, Cp = _round_up(M, TM), _round_up(K, TK), _round_up(C, TN)

    xp = _pad_to(x, (Bx, Mp, Kp))
    wp = _pad_to(w, (Bw, Kp, Cp))
    scp = _pad_to(scale, (Bs, 1, Cp))
    shp = _pad_to(shift, (Bt, 1, Cp))

    nm, nn, nk = Mp // TM, Cp // TN, Kp // TK

    x_map = (lambda b, i, j, k: (b, i, k)) if Bx > 1 else (lambda b, i, j, k: (0, i, k))
    w_map = (lambda b, i, j, k: (b, k, j)) if Bw > 1 else (lambda b, i, j, k: (0, k, j))
    s_map = (lambda b, i, j, k: (b, 0, j)) if Bs > 1 else (lambda b, i, j, k: (0, 0, j))
    t_map = (lambda b, i, j, k: (b, 0, j)) if Bt > 1 else (lambda b, i, j, k: (0, 0, j))

    out_bytes = jnp.dtype(out_dtype).itemsize
    blk_bytes = TM * TK * 2 + TK * TN * 2 + TM * TN * (out_bytes + 4) + 2 * TN * 4

    out = pl.pallas_call(
        functools.partial(_mm_bn_act_kernel, relu=relu, nk=nk),
        out_shape=jax.ShapeDtypeStruct((B, Mp, Cp), out_dtype),
        grid=(B, nm, nn, nk),
        in_specs=[
            pl.BlockSpec((None, TM, TK), x_map),
            pl.BlockSpec((None, TK, TN), w_map),
            pl.BlockSpec((None, 1, TN), s_map),
            pl.BlockSpec((None, 1, TN), t_map),
        ],
        out_specs=pl.BlockSpec((None, TM, TN), lambda b, i, j, k: (b, i, j)),
        scratch_shapes=[pltpu.VMEM((TM, TN), jnp.float32)],
        compiler_params=_compiler_params(
            ("parallel", "parallel", "parallel", "arbitrary"), blk_bytes),
    )(xp, wp, scp, shp)

    out = out[:, :M, :]
    if trim_cout and Cp != C:
        out = out[:, :, :C]
    return out


# ----------------------------------------------------------------------------
# Fused ASPP branches: 1x1 + three dilated 3x3 + global avg pool, one read of xo
# ----------------------------------------------------------------------------
def _aspp_branches_kernel(x_ref, w0_ref, w3_ref, sc_ref, sh_ref,
                          cat_ref, pool_ref, *, H, Wc, rates, pad, inv_hw):
    hw = H * Wc
    cin = x_ref.shape[-1]
    cout = w0_ref.shape[-1]

    def bn_relu(acc, i):
        return jnp.maximum(acc * sc_ref[i] + sh_ref[i], 0.0)

    # centre view of the halo-padded block (shared by 1x1 branch and GAP)
    xc = x_ref[pad:pad + H, pad:pad + Wc, :].reshape(hw, cin)
    pool_ref[...] = jnp.sum(xc.astype(jnp.float32), axis=0, keepdims=True) * inv_hw

    b0 = jnp.dot(xc, w0_ref[...], preferred_element_type=jnp.float32)
    cat_ref[:, 0:cout] = bn_relu(b0, 0).astype(cat_ref.dtype)

    # dilated 3x3 branches: 9 shifted views of the same VMEM-resident block
    for bi, rate in enumerate(rates):
        acc = jnp.zeros((hw, cout), jnp.float32)
        for t in range(9):
            dy, dx = divmod(t, 3)
            oy = pad + (dy - 1) * rate
            ox = pad + (dx - 1) * rate
            patch = x_ref[oy:oy + H, ox:ox + Wc, :].reshape(hw, cin)
            acc = acc + jnp.dot(patch, w3_ref[bi, t],
                                preferred_element_type=jnp.float32)
        col = (bi + 1) * cout
        cat_ref[:, col:col + cout] = bn_relu(acc, bi + 1).astype(cat_ref.dtype)


def aspp_branches(xo_nhwc, w0, w3, scales, shifts, rates):
    N, H, W, Cin = xo_nhwc.shape
    cout = w0.shape[-1]
    P = max(rates)
    Wc = _round_up(W, _W_ALIGN)
    x_pad = jnp.pad(xo_nhwc, ((0, 0), (P, P), (P, P + Wc - W), (0, 0)))
    Hp, Wp = x_pad.shape[1], x_pad.shape[2]
    hw = H * Wc

    kern = functools.partial(_aspp_branches_kernel, H=H, Wc=Wc,
                             rates=tuple(rates), pad=P, inv_hw=1.0 / float(H * W))
    blk_bytes = (Hp * Wp * Cin * 2 + 28 * Cin * cout * 2
                 + hw * 4 * cout * 2 + hw * cout * 8 + Cin * 4 + 8 * cout * 4)

    cat, pooled = pl.pallas_call(
        kern,
        out_shape=(jax.ShapeDtypeStruct((N, hw, 4 * cout), jnp.bfloat16),
                   jax.ShapeDtypeStruct((N, 1, Cin), jnp.float32)),
        grid=(N,),
        in_specs=[
            pl.BlockSpec((None, Hp, Wp, Cin), lambda n: (n, 0, 0, 0)),
            pl.BlockSpec((Cin, cout), lambda n: (0, 0)),
            pl.BlockSpec((3, 9, Cin, cout), lambda n: (0, 0, 0, 0)),
            pl.BlockSpec((4, 1, cout), lambda n: (0, 0, 0)),
            pl.BlockSpec((4, 1, cout), lambda n: (0, 0, 0)),
        ],
        out_specs=(
            pl.BlockSpec((None, hw, 4 * cout), lambda n: (n, 0, 0)),
            pl.BlockSpec((None, 1, Cin), lambda n: (n, 0, 0)),
        ),
        compiler_params=_compiler_params(("parallel",), blk_bytes),
    )(x_pad, w0, w3, scales, shifts)
    return cat, pooled, Wc


# ----------------------------------------------------------------------------
# Fused classifier: 3x3 conv (split inputs, no 304-concat) + BN + ReLU + 1x1
# ----------------------------------------------------------------------------
def _classifier_kernel(a_ref, b_ref, wa_ref, wb_ref, sc_ref, sh_ref,
                       w1_ref, b1_ref, o_ref, *, H, Wc):
    hw = H * Wc
    ca, cb = a_ref.shape[-1], b_ref.shape[-1]
    cmid = wa_ref.shape[-1]
    acc = jnp.zeros((hw, cmid), jnp.float32)
    for t in range(9):
        dy, dx = divmod(t, 3)
        pa = a_ref[dy:dy + H, dx:dx + Wc, :].reshape(hw, ca)
        pb = b_ref[dy:dy + H, dx:dx + Wc, :].reshape(hw, cb)
        acc = acc + jnp.dot(pa, wa_ref[t], preferred_element_type=jnp.float32)
        acc = acc + jnp.dot(pb, wb_ref[t], preferred_element_type=jnp.float32)
    y = jnp.maximum(acc * sc_ref[...] + sh_ref[...], 0.0)
    logits = jnp.dot(y.astype(w1_ref.dtype), w1_ref[...],
                     preferred_element_type=jnp.float32) + b1_ref[...]
    o_ref[...] = logits.astype(o_ref.dtype)


def classifier_head(llp_nhwc, aspp_nhwc, wa, wb, sc, sh, w1, b1):
    N, H, W, Ca = llp_nhwc.shape
    Cb = aspp_nhwc.shape[-1]
    cmid = wa.shape[-1]
    ncp = w1.shape[-1]
    Wc = _round_up(W, _W_ALIGN)
    a_pad = jnp.pad(llp_nhwc, ((0, 0), (1, 1), (1, 1 + Wc - W), (0, 0)))
    b_pad = jnp.pad(aspp_nhwc, ((0, 0), (1, 1), (1, 1 + Wc - W), (0, 0)))
    Hp, Wp = a_pad.shape[1], a_pad.shape[2]
    hw = H * Wc
    blk_bytes = (Hp * Wp * (Ca + Cb) * 2 + 9 * (Ca + Cb) * cmid * 2
                 + cmid * ncp * 2 + hw * ncp * 4 + hw * cmid * 8)

    out = pl.pallas_call(
        functools.partial(_classifier_kernel, H=H, Wc=Wc),
        out_shape=jax.ShapeDtypeStruct((N, hw, ncp), jnp.float32),
        grid=(N,),
        in_specs=[
            pl.BlockSpec((None, Hp, Wp, Ca), lambda n: (n, 0, 0, 0)),
            pl.BlockSpec((None, Hp, Wp, Cb), lambda n: (n, 0, 0, 0)),
            pl.BlockSpec((9, Ca, cmid), lambda n: (0, 0, 0)),
            pl.BlockSpec((9, Cb, cmid), lambda n: (0, 0, 0)),
            pl.BlockSpec((1, cmid), lambda n: (0, 0)),
            pl.BlockSpec((1, cmid), lambda n: (0, 0)),
            pl.BlockSpec((cmid, ncp), lambda n: (0, 0)),
            pl.BlockSpec((1, ncp), lambda n: (0, 0)),
        ],
        out_specs=pl.BlockSpec((None, hw, ncp), lambda n: (n, 0, 0)),
        compiler_params=_compiler_params(("parallel",), blk_bytes),
    )(a_pad, b_pad, wa, wb, sc, sh, w1, b1)
    return out, Wc


# ----------------------------------------------------------------------------
# Bilinear (align_corners=False) interpolation matrices
# ----------------------------------------------------------------------------
def _bilinear_1d(in_size, out_size):
    scale = in_size / out_size
    A = np.zeros((out_size, in_size), np.float32)
    for i in range(out_size):
        src = max((i + 0.5) * scale - 0.5, 0.0)
        i0 = min(int(np.floor(src)), in_size - 1)
        i1 = i0 + (1 if i0 < in_size - 1 else 0)
        frac = src - i0
        A[i, i0] += 1.0 - frac
        A[i, i1] += frac
    return A


def _bilinear_matrix_2d(Hin, Win, Hout, Wout, Win_padded):
    Ah = _bilinear_1d(Hin, Hout)                 # (Hout, Hin)
    Aw = _bilinear_1d(Win, Wout)                 # (Wout, Win)
    Awp = np.zeros((Wout, Win_padded), np.float32)
    Awp[:, :Win] = Aw
    return np.kron(Ah, Awp)                      # (Hout*Wout, Hin*Win_padded)


# ----------------------------------------------------------------------------
# Parameters (mirrors module __init__ / _init_weight; BN in eval mode)
# ----------------------------------------------------------------------------
def init_params(key, in_channels, low_level_channels, num_classes,
                aspp_dilate=(12, 24, 36)):
    keys = jax.random.split(key, 10)

    def kaiming(k, cout, cin, kh, kw):
        fan_in = cin * kh * kw
        return jax.random.normal(k, (cout, cin, kh, kw), jnp.float32) * math.sqrt(2.0 / fan_in)

    def mat1x1(w):                       # (Cout,Cin,1,1) -> (Cin,Cout)
        return jnp.transpose(w[:, :, 0, 0], (1, 0))

    def taps3x3(w):                      # (Cout,Cin,3,3) -> (9,Cin,Cout), t = ky*3+kx
        return jnp.transpose(w, (2, 3, 1, 0)).reshape(9, w.shape[1], w.shape[0])

    bn_s = 1.0 / math.sqrt(1.0 + BN_EPS)   # eval BN: gamma=1, beta=0, mean=0, var=1

    p = {'aspp_rates': tuple(aspp_dilate), 'num_classes': num_classes}

    # low-level projection: 1x1 (low_ch -> 48) + BN + ReLU
    p['proj_w'] = mat1x1(kaiming(keys[0], 48, low_level_channels, 1, 1)).astype(jnp.bfloat16)
    p['proj_scale'] = jnp.full((1, 48), bn_s, jnp.float32)
    p['proj_shift'] = jnp.zeros((1, 48), jnp.float32)

    # ASPP branch weights (1x1 + three dilated 3x3)
    p['aspp0_w'] = mat1x1(kaiming(keys[1], 256, in_channels, 1, 1)).astype(jnp.bfloat16)
    p['aspp3_w'] = jnp.stack(
        [taps3x3(kaiming(keys[2 + i], 256, in_channels, 3, 3)) for i in range(3)],
        axis=0).astype(jnp.bfloat16)                          # (3,9,Cin,256)
    p['aspp_br_scale'] = jnp.full((4, 1, 256), bn_s, jnp.float32)
    p['aspp_br_shift'] = jnp.zeros((4, 1, 256), jnp.float32)

    # ASPP pooling branch 1x1
    p['aspp_pool_w'] = mat1x1(kaiming(keys[5], 256, in_channels, 1, 1)).astype(jnp.bfloat16)
    p['aspp_pool_scale'] = jnp.full((1, 256), bn_s, jnp.float32)
    p['aspp_pool_shift'] = jnp.zeros((1, 256), jnp.float32)

    # ASPP projection 1x1 (1280 -> 256): split branch part / pooled part
    wproj = mat1x1(kaiming(keys[6], 256, 5 * 256, 1, 1))      # (1280,256)
    p['aspp_proj_w'] = wproj[:4 * 256].astype(jnp.bfloat16)
    p['aspp_projP_w'] = wproj[4 * 256:].astype(jnp.bfloat16)
    p['aspp_proj_scale'] = jnp.full((1, 256), bn_s, jnp.float32)
    p['aspp_proj_shift'] = jnp.zeros((1, 256), jnp.float32)

    # classifier: 3x3 (304 -> 256) split into llp (48, padded to 128) / aspp (256)
    t = taps3x3(kaiming(keys[7], 256, 304, 3, 3))             # (9,304,256)
    wa = jnp.zeros((9, 128, 256), jnp.float32).at[:, :48, :].set(t[:, :48, :])
    p['cls0_wa'] = wa.astype(jnp.bfloat16)
    p['cls0_wb'] = t[:, 48:, :].astype(jnp.bfloat16)
    p['cls0_scale'] = jnp.full((1, 256), bn_s, jnp.float32)
    p['cls0_shift'] = jnp.zeros((1, 256), jnp.float32)

    # classifier 1x1 (256 -> num_classes, bias), Cout lane-padded to 128
    ncp = _round_up(num_classes, _LANE)
    w1 = mat1x1(kaiming(keys[8], num_classes, 256, 1, 1))     # (256,nc)
    p['cls1_w'] = jnp.zeros((256, ncp), jnp.float32).at[:, :num_classes].set(w1).astype(jnp.bfloat16)
    bound = 1.0 / math.sqrt(256.0)
    b1 = jax.random.uniform(keys[9], (num_classes,), jnp.float32, -bound, bound)
    p['cls1_b'] = jnp.zeros((1, ncp), jnp.float32).at[0, :num_classes].set(b1)
    return p


# ----------------------------------------------------------------------------
# Forward pass
# ----------------------------------------------------------------------------
def deeplab_head_v3plus(params, feature):
    ll = jnp.transpose(feature['low_level'], (0, 2, 3, 1)).astype(jnp.bfloat16)
    xo = jnp.transpose(feature['out'], (0, 2, 3, 1)).astype(jnp.bfloat16)
    N, Hl, Wl, Cll = ll.shape
    _, Ho, Wo, Cin = xo.shape
    rates = params['aspp_rates']
    nc = params['num_classes']

    # low-level projection (1x1 + BN + ReLU), Cout kept lane-padded 48 -> 128
    llp = matmul_bn_act(ll.reshape(N, Hl * Wl, Cll), params['proj_w'][None],
                        params['proj_scale'][None], params['proj_shift'][None],
                        relu=True, out_dtype=jnp.bfloat16, trim_cout=False)

    # fused ASPP branches (+ GAP): xo read once per image, 1024-ch concat written once
    cat, pooled, Wc = aspp_branches(xo, params['aspp0_w'], params['aspp3_w'],
                                    params['aspp_br_scale'], params['aspp_br_shift'],
                                    rates)

    # pooling-branch tail, folded into the projection as a per-image shift
    pb = matmul_bn_act(pooled, params['aspp_pool_w'][None],
                       params['aspp_pool_scale'][None], params['aspp_pool_shift'][None],
                       relu=True, out_dtype=jnp.bfloat16)              # (N,1,256)
    shift_n = matmul_bn_act(pb, params['aspp_projP_w'][None],
                            params['aspp_proj_scale'][None], params['aspp_proj_shift'][None],
                            relu=False, out_dtype=jnp.float32)         # (N,1,256)

    # ASPP projection (K=1024, reduction-tiled, per-image shift)
    # TODO(synk): nn.Dropout(0.1) skipped (identity in eval mode).
    aspp_out = matmul_bn_act(cat, params['aspp_proj_w'][None],
                             params['aspp_proj_scale'][None], shift_n,
                             relu=True, out_dtype=jnp.bfloat16)        # (N, Ho*Wc, 256)

    # bilinear upsample to low-level resolution, lane-dense (C stays on lanes)
    A = jnp.asarray(_bilinear_matrix_2d(Ho, Wo, Hl, Wl, Wc), jnp.bfloat16)
    ones = jnp.ones((1, 1, 256), jnp.float32)
    zeros = jnp.zeros((1, 1, 256), jnp.float32)
    aspp_up = matmul_bn_act(A[None], aspp_out, ones, zeros,
                            relu=False, out_dtype=jnp.bfloat16)        # (N, Hl*Wl, 256)

    # fused classifier: 3x3 (no 304-concat) + BN + ReLU + 1x1 (+bias), padded lanes
    out, Wcl = classifier_head(llp.reshape(N, Hl, Wl, -1),
                               aspp_up.reshape(N, Hl, Wl, 256),
                               params['cls0_wa'], params['cls0_wb'],
                               params['cls0_scale'], params['cls0_shift'],
                               params['cls1_w'], params['cls1_b'])
    logits = out.reshape(N, Hl, Wcl, -1)[:, :, :Wl, :nc]
    return jnp.transpose(logits, (0, 3, 1, 2))                         # NCHW


# ----------------------------------------------------------------------------
if __name__ == "__main__":
    key = jax.random.PRNGKey(0)
    k_ll, k_out, k_param = jax.random.split(key, 3)

    N = 2
    in_channels = 32          # channels of backbone 'out' feature
    low_level_channels = 24   # channels of backbone 'low_level' feature
    num_classes = 21
    H_low, W_low = 16, 16
    H_out, W_out = 8, 8

    feature = {
        'low_level': jax.random.normal(k_ll, (N, low_level_channels, H_low, W_low), jnp.float32),
        'out': jax.random.normal(k_out, (N, in_channels, H_out, W_out), jnp.float32),
    }
    params = init_params(k_param, in_channels, low_level_channels, num_classes)

    logits = deeplab_head_v3plus(params, feature)
    logits = jax.block_until_ready(logits)
    assert logits.shape == (N, num_classes, H_low, W_low), logits.shape
    assert bool(jnp.all(jnp.isfinite(logits)))
    print("KERNEL_OK")
</pallas_src>

<mosaic_0001>
module attributes {stable_mosaic.version = 11 : i64} {
  func.func @_mm_bn_act_kernel(%arg0: i32, %arg1: i32, %arg2: i32, %arg3: i32, %arg4: memref<1x256x128xbf16, #tpu.memory_space<vmem>>, %arg5: memref<1x128x128xbf16, #tpu.memory_space<vmem>>, %arg6: memref<1x1x128xf32, #tpu.memory_space<vmem>>, %arg7: memref<1x1x128xf32, #tpu.memory_space<vmem>>, %arg8: memref<1x256x128xbf16, #tpu.memory_space<vmem>>, %arg9: memref<256x128xf32, #tpu.memory_space<vmem>>) attributes {dimension_semantics = [#tpu.dimension_semantics<parallel>, #tpu.dimension_semantics<parallel>, #tpu.dimension_semantics<parallel>, #tpu.dimension_semantics<arbitrary>], iteration_bounds = array<i64: 2, 1, 1, 1>, scalar_prefetch = 0 : i64, scratch_operands = 1 : i64, tpu.core_type = #tpu.core_type<tc>, window_params = [{transform_indices = @transform_0, window_bounds = array<i64: 1, 256, 128>}, {transform_indices = @transform_1, window_bounds = array<i64: 1, 128, 128>}, {transform_indices = @transform_2, window_bounds = array<i64: 1, 1, 128>}, {transform_indices = @transform_3, window_bounds = array<i64: 1, 1, 128>}, {transform_indices = @transform_4, window_bounds = array<i64: 1, 256, 128>}]} {
    %c0_i32 = arith.constant 0 : i32
    %0 = arith.cmpi eq, %arg3, %c0_i32 : i32
    %1 = arith.extui %0 : i1 to i32
    %c0_i32_0 = arith.constant 0 : i32
    %2 = arith.cmpi ne, %1, %c0_i32_0 : i32
    scf.if %2 {
      %cst_12 = arith.constant 0.000000e+00 : f32
      %14 = vector.broadcast %cst_12 : f32 to vector<256x128xf32>
      %c0_13 = arith.constant 0 : index
      %c0_14 = arith.constant 0 : index
      %15 = vector.load %arg9[%c0_13, %c0_14] : memref<256x128xf32, #tpu.memory_space<vmem>>, vector<256x128xf32>
      tpu.vector_store %arg9[%c0_13, %c0_14], %14 {strides = array<i32>} : memref<256x128xf32, #tpu.memory_space<vmem>>, vector<256x128xf32>,
    } else {
    }
    %c0 = arith.constant 0 : index
    %c0_1 = arith.constant 0 : index
    %3 = vector.load %arg9[%c0, %c0_1] : memref<256x128xf32, #tpu.memory_space<vmem>>, vector<256x128xf32>
    %c0_2 = arith.constant 0 : index
    %c0_3 = arith.constant 0 : index
    %c0_4 = arith.constant 0 : index
    %4 = vector.load %arg4[%c0_2, %c0_3, %c0_4] : memref<1x256x128xbf16, #tpu.memory_space<vmem>>, vector<1x256x128xbf16>
    %5 = vector.shape_cast %4 : vector<1x256x128xbf16> to vector<256x128xbf16>
    %c0_5 = arith.constant 0 : index
    %c0_6 = arith.constant 0 : index
    %c0_7 = arith.constant 0 : index
    %6 = vector.load %arg5[%c0_5, %c0_6, %c0_7] : memref<1x128x128xbf16, #tpu.memory_space<vmem>>, vector<1x128x128xbf16>
    %7 = vector.shape_cast %6 : vector<1x128x128xbf16> to vector<128x128xbf16>
    %cst = arith.constant dense<0.000000e+00> : vector<256x128xf32>
    %8 = tpu.matmul %5, %7, %cst {dimension_numbers = #tpu.dot_dimension_numbers<[1], [0], [0], [1], [0, 0, 1, 1], [], []>} : vector<256x128xbf16>, vector<128x128xbf16>, vector<256x128xf32> -> vector<256x128xf32>
    %9 = arith.addf %3, %8 : vector<256x128xf32>
    %c0_8 = arith.constant 0 : index
    %c0_9 = arith.constant 0 : index
    %10 = vector.load %arg9[%c0_8, %c0_9] : memref<256x128xf32, #tpu.memory_space<vmem>>, vector<256x128xf32>
    tpu.vector_store %arg9[%c0_8, %c0_9], %9 {strides = array<i32>} : memref<256x128xf32, #tpu.memory_space<vmem>>, vector<256x128xf32>,
    %c0_i32_10 = arith.constant 0 : i32
    %11 = arith.cmpi eq, %arg3, %c0_i32_10 : i32
    %12 = arith.extui %11 : i1 to i32
    %c0_i32_11 = arith.constant 0 : i32
    %13 = arith.cmpi ne, %12, %c0_i32_11 : i32
    scf.if %13 {
      %c0_12 = arith.constant 0 : index
      %c0_13 = arith.constant 0 : index
      %14 = vector.load %arg9[%c0_12, %c0_13] : memref<256x128xf32, #tpu.memory_space<vmem>>, vector<256x128xf32>
      %c0_14 = arith.constant 0 : index
      %c0_15 = arith.constant 0 : index
      %c0_16 = arith.constant 0 : index
      %15 = vector.load %arg6[%c0_14, %c0_15, %c0_16] : memref<1x1x128xf32, #tpu.memory_space<vmem>>, vector<1x1x128xf32>
      %16 = vector.shape_cast %15 : vector<1x1x128xf32> to vector<1x128xf32>
      %17 = vector.broadcast %16 : vector<1x128xf32> to vector<256x128xf32>
      %18 = arith.mulf %14, %17 : vector<256x128xf32>
      %c0_17 = arith.constant 0 : index
      %c0_18 = arith.constant 0 : index
      %c0_19 = arith.constant 0 : index
      %19 = vector.load %arg7[%c0_17, %c0_18, %c0_19] : memref<1x1x128xf32, #tpu.memory_space<vmem>>, vector<1x1x128xf32>
      %20 = vector.shape_cast %19 : vector<1x1x128xf32> to vector<1x128xf32>
      %21 = vector.broadcast %20 : vector<1x128xf32> to vector<256x128xf32>
      %22 = arith.addf %18, %21 : vector<256x128xf32>
      %cst_20 = arith.constant 0.000000e+00 : f32
      %23 = vector.broadcast %cst_20 : f32 to vector<256x128xf32>
      %24 = arith.maximumf %22, %23 : vector<256x128xf32>
      %25 = arith.truncf %24 : vector<256x128xf32> to vector<256x128xbf16>
      %c0_21 = arith.constant 0 : index
      %c0_22 = arith.constant 0 : index
      %c0_23 = arith.constant 0 : index
      %26 = vector.load %arg8[%c0_21, %c0_22, %c0_23] : memref<1x256x128xbf16, #tpu.memory_space<vmem>>, vector<1x256x128xbf16>
      %27 = vector.shape_cast %26 : vector<1x256x128xbf16> to vector<256x128xbf16>
      %28 = vector.shape_cast %25 : vector<256x128xbf16> to vector<1x256x128xbf16>
      tpu.vector_store %arg8[%c0_21, %c0_22, %c0_23], %28 {strides = array<i32>} : memref<1x256x128xbf16, #tpu.memory_space<vmem>>, vector<1x256x128xbf16>,
    } else {
    }
    return
  }
  func.func @transform_0(%arg0: i32, %arg1: i32, %arg2: i32, %arg3: i32) -> (i32, i32, i32) {
    %c0_i32 = arith.constant 0 : i32
    return %arg0, %arg1, %arg3 : i32, i32, i32
  }
  func.func @transform_1(%arg0: i32, %arg1: i32, %arg2: i32, %arg3: i32) -> (i32, i32, i32) {
    %c0_i32 = arith.constant 0 : i32
    %c0_i32_0 = arith.constant 0 : i32
    return %c0_i32, %arg3, %arg2 : i32, i32, i32
  }
  func.func @transform_2(%arg0: i32, %arg1: i32, %arg2: i32, %arg3: i32) -> (i32, i32, i32) {
    %c0_i32 = arith.constant 0 : i32
    %c0_i32_0 = arith.constant 0 : i32
    %c0_i32_1 = arith.constant 0 : i32
    return %c0_i32, %c0_i32_0, %arg2 : i32, i32, i32
  }
  func.func @transform_3(%arg0: i32, %arg1: i32, %arg2: i32, %arg3: i32) -> (i32, i32, i32) {
    %c0_i32 = arith.constant 0 : i32
    %c0_i32_0 = arith.constant 0 : i32
    %c0_i32_1 = arith.constant 0 : i32
    return %c0_i32, %c0_i32_0, %arg2 : i32, i32, i32
  }
  func.func @transform_4(%arg0: i32, %arg1: i32, %arg2: i32, %arg3: i32) -> (i32, i32, i32) {
    %c0_i32 = arith.constant 0 : i32
    return %arg0, %arg1, %arg2 : i32, i32, i32
  }
}

</mosaic_0001>

<llo_original>
// kernel: tpu_custom_call.1
$region0: #{tpu_custom_call.1}
  #allocation0 [shape = 'u32[]', space=smem, size = 0x4, offset = 0x4, fixed_abs, tag = 'smem constant byte address 0x4 - core index']
  #allocation1 [shape = 'u32[144,128]{1,0:T(1,128)}', space=vmem, size = 0x12000, scoped, tag = 'internal scratch']
  #allocation2 [shape = 'f32[256,128]{1,0:T(8,128)}', space=vmem, size = 0x20000, scoped, tag = 'scratch operand']
  %s0 = inlined_call_operand.hbm [shape: bf16[2,256,128], index: 0, kind: input, shape index: {}]
  %s1 = inlined_call_operand.hbm [shape: bf16[1,128,128], index: 1, kind: input, shape index: {}]
  %s2 = inlined_call_operand.vmem [shape: f32[1,1,128], index: 2, kind: input, shape index: {}]
  %s3 = inlined_call_operand.vmem [shape: f32[1,1,128], index: 3, kind: input, shape index: {}]
  %s4 = inlined_call_operand.hbm [shape: bf16[2,256,128], index: 4, kind: output, shape index: {}]
  %s5 = sld [smem:[#allocation0]]
  $region65: #{tpu_custom_call.1} parent=0
    _
  %s7 = ssub.s32 1, %s5
  %s8 = scalar_select 0, %s7, %s5
  $region1: #{tpu_custom_call.1} parent=0
    #allocation3 [shape = 'u8[131072]{0}', space=vmem, size = 0x20000, scoped, tag = 'input window, operand 0']
    #allocation4 [shape = 's32[2]{0}', space=sflag, size = 0x8, scoped, tag = 'scoped memory for tpu_custom_call.1']
    #allocation5 [shape = 's32[2]{0}', space=sflag, size = 0x8, scoped, tag = 'scoped memory for tpu_custom_call.1']
    #allocation6 [shape = 'u8[32768]{0}', space=vmem, size = 0x8000, scoped, tag = 'input window, operand 1, single buffered']
    #allocation7 [shape = 's32[1]{0}', space=sflag, size = 0x4, scoped, tag = 'scoped memory for tpu_custom_call.1']
    #allocation8 [shape = 'u8[131072]{0}', space=vmem, size = 0x20000, scoped, tag = 'output window, operand 0']
    %9 = vsyncpa [#allocation4], 0
    %s10 = scalar_lea.sflag [#allocation4], 1
    %11 = vsyncpa %s10, 0
    %12 = vsyncpa [#allocation7], 0
    %13 = vsyncpa [#allocation5], 0
    %s14 = scalar_lea.sflag [#allocation5], 1
    %15 = vsyncpa %s14, 0
    loop: start=0, step=1, limit=4
    $region2: #{tpu_custom_call.1} parent=1 // loop_pre_header
      _
    $region3: #{tpu_custom_call.1} parent=1 // loop_header
      %s17 = sphi 0, %s21
      %p18 = scmp.ge.s32.totalorder %s17, 4
      %s24 = sphi 0, %s50
      %s25 = sphi 0, %s46
      %s26 = sphi 0, %s42
      %s27 = sphi 0, %s38
      %s28 = sphi 0, %s24
      %s29 = sphi 0, %s25
      %s30 = sphi 0, %s26
      %s31 = sphi 0, %s27
      %s32 = sphi 0, %s28
      %s33 = sphi 0, %s29
      %s34 = sphi 0, %s30
      %s35 = sphi 0, %s31
      %s57 = sphi 0, %s59
      %s60 = sphi 0, %s57
      %s61 = sphi 0, %s60
      %s77 = sphi 0, %s61
      %s85 = sphi 0, %s87
      %s88 = sphi 0, %s85
      %s89 = sphi 0, %s88
      %s105 = sphi 0, %s89
      %s111 = sphi 0, %s113
      %s114 = sphi 0, %s111
      %s115 = sphi 0, %s114
      %s131 = sphi 0, %s115
      %s137 = sphi 0, %s139
      %s140 = sphi 0, %s137
      %s141 = sphi 0, %s140
      %s157 = sphi 0, %s141
      %s167 = sphi 0, %s169
      %s170 = sphi 0, %s167
      %s171 = sphi 0, %s170
      %s187 = sphi 0, %s171
    $region4: #{tpu_custom_call.1} parent=1 // loop_header_branch
      %20 = sbr.rel (%p18) target = $region8
    $region5: #{tpu_custom_call.1} parent=1 // loop_body
      %s22 = ssub.s32 %s17, 1
      %s23 = ssub.s32 %s17, 2
      %s36 = sadd.s32 1, %s27
      %p37 = scmp.ge.s32.totalorder %s36, 1
      %s38 = scalar_select %p37, 0, %s36
      %s39 = sadd.s32 1, %s26
      %s40 = scalar_select %p37, %s39, %s26
      %p41 = scmp.ge.s32.totalorder %s40, 1
      %s42 = scalar_select %p41, 0, %s40
      %s43 = sadd.s32 1, %s25
      %s44 = scalar_select %p41, %s43, %s25
      %p45 = scmp.ge.s32.totalorder %s44, 1
      %s46 = scalar_select %p45, 0, %s44
      %s47 = sadd.s32 1, %s24
      %s48 = scalar_select %p45, %s47, %s24
      %p49 = scmp.ge.s32.totalorder %s48, 2
      %s50 = scalar_select %p49, 0, %s48
      %s51 = ssub.s32 %s24, %s50
      %s52 = ssub.s32 %s25, %s46
      %s53 = sor.u32 %s51, %s52
      %s54 = ssub.s32 %s27, %s38
      %s55 = sor.u32 %s53, %s54
      %p56 = scmp.eq.s32.totalorder %s55, 0
      %s58 = sadd.s32 %s57, 1
      %s59 = scalar_select %p56, %s57, %s58
      %p62 = pneg %p56
      %p63 = scmp.eq.s32.totalorder %s17, 1
      %p64 = por %p62, %p63
      %p65 = scmp.ne.s32.totalorder %s57, %s60
      %p66 = scmp.eq.s32.totalorder %s17, 0
      %p67 = por %p65, %p66
      %p68 = scmp.ne.s32.totalorder %s57, %s60
      %p69 = scmp.eq.s32.totalorder %s22, 1
      %p70 = por %p68, %p69
      %p71 = scmp.ne.s32.totalorder %s60, %s61
      %p72 = scmp.eq.s32.totalorder %s22, 0
      %p73 = por %p71, %p72
      %p74 = scmp.ne.s32.totalorder %s60, %s61
      %p75 = scmp.eq.s32.totalorder %s23, 1
      %p76 = por %p74, %p75
      %p78 = scmp.ne.s32.totalorder %s61, %s77
      %p79 = scmp.eq.s32.totalorder %s23, 0
      %p80 = por %p78, %p79
      %s81 = ssub.s32 %s27, %s38
      %s82 = ssub.s32 %s26, %s42
      %s83 = sor.u32 %s81, %s82
      %p84 = scmp.eq.s32.totalorder %s83, 0
      %s86 = sadd.s32 %s85, 1
      %s87 = scalar_select %p84, %s85, %s86
      %p90 = pneg %p84
      %p91 = scmp.eq.s32.totalorder %s17, 1
      %p92 = por %p90, %p91
      %p93 = scmp.ne.s32.totalorder %s85, %s88
      %p94 = scmp.eq.s32.totalorder %s17, 0
      %p95 = por %p93, %p94
      %p96 = scmp.ne.s32.totalorder %s85, %s88
      %p97 = scmp.eq.s32.totalorder %s22, 1
      %p98 = por %p96, %p97
      %p99 = scmp.ne.s32.totalorder %s88, %s89
      %p100 = scmp.eq.s32.totalorder %s22, 0
      %p101 = por %p99, %p100
      %p102 = scmp.ne.s32.totalorder %s88, %s89
      %p103 = scmp.eq.s32.totalorder %s23, 1
      %p104 = por %p102, %p103
      %p106 = scmp.ne.s32.totalorder %s89, %s105
      %p107 = scmp.eq.s32.totalorder %s23, 0
      %p108 = por %p106, %p107
      %s109 = ssub.s32 %s26, %s42
      %p110 = scmp.eq.s32.totalorder %s109, 0
      %s112 = sadd.s32 %s111, 1
      %s113 = scalar_select %p110, %s111, %s112
      %p116 = pneg %p110
      %p117 = scmp.eq.s32.totalorder %s17, 1
      %p118 = por %p116, %p117
      %p119 = scmp.ne.s32.totalorder %s111, %s114
      %p120 = scmp.eq.s32.totalorder %s17, 0
      %p121 = por %p119, %p120
      %p122 = scmp.ne.s32.totalorder %s111, %s114
      %p123 = scmp.eq.s32.totalorder %s22, 1
      %p124 = por %p122, %p123
      %p125 = scmp.ne.s32.totalorder %s114, %s115
      %p126 = scmp.eq.s32.totalorder %s22, 0
      %p127 = por %p125, %p126
      %p128 = scmp.ne.s32.totalorder %s114, %s115
      %p129 = scmp.eq.s32.totalorder %s23, 1
      %p130 = por %p128, %p129
      %p132 = scmp.ne.s32.totalorder %s115, %s131
      %p133 = scmp.eq.s32.totalorder %s23, 0
      %p134 = por %p132, %p133
      %s135 = ssub.s32 %s26, %s42
      %p136 = scmp.eq.s32.totalorder %s135, 0
      %s138 = sadd.s32 %s137, 1
      %s139 = scalar_select %p136, %s137, %s138
      %p142 = pneg %p136
      %p143 = scmp.eq.s32.totalorder %s17, 1
      %p144 = por %p142, %p143
      %p145 = scmp.ne.s32.totalorder %s137, %s140
      %p146 = scmp.eq.s32.totalorder %s17, 0
      %p147 = por %p145, %p146
      %p148 = scmp.ne.s32.totalorder %s137, %s140
      %p149 = scmp.eq.s32.totalorder %s22, 1
      %p150 = por %p148, %p149
      %p151 = scmp.ne.s32.totalorder %s140, %s141
      %p152 = scmp.eq.s32.totalorder %s22, 0
      %p153 = por %p151, %p152
      %p154 = scmp.ne.s32.totalorder %s140, %s141
      %p155 = scmp.eq.s32.totalorder %s23, 1
      %p156 = por %p154, %p155
      %p158 = scmp.ne.s32.totalorder %s141, %s157
      %p159 = scmp.eq.s32.totalorder %s23, 0
      %p160 = por %p158, %p159
      %s161 = ssub.s32 %s24, %s50
      %s162 = ssub.s32 %s25, %s46
      %s163 = sor.u32 %s161, %s162
      %s164 = ssub.s32 %s26, %s42
      %s165 = sor.u32 %s163, %s164
      %p166 = scmp.eq.s32.totalorder %s165, 0
      %s168 = sadd.s32 %s167, 1
      %s169 = scalar_select %p166, %s167, %s168
      %p172 = pneg %p166
      %p173 = scmp.eq.s32.totalorder %s17, 1
      %p174 = por %p172, %p173
      %p175 = scmp.ne.s32.totalorder %s167, %s170
      %p176 = scmp.eq.s32.totalorder %s17, 0
      %p177 = por %p175, %p176
      %p178 = scmp.ne.s32.totalorder %s167, %s170
      %p179 = scmp.eq.s32.totalorder %s22, 1
      %p180 = por %p178, %p179
      %p181 = scmp.ne.s32.totalorder %s170, %s171
      %p182 = scmp.eq.s32.totalorder %s22, 0
      %p183 = por %p181, %p182
      %p184 = scmp.ne.s32.totalorder %s170, %s171
      %p185 = scmp.eq.s32.totalorder %s23, 1
      %p186 = por %p184, %p185
      %p188 = scmp.ne.s32.totalorder %s171, %s187
      %p189 = scmp.eq.s32.totalorder %s23, 0
      %p190 = por %p188, %p189
      %p191 = scmp.le.s32.totalorder 1, %s17
      %p192 = scmp.lt.s32.totalorder %s17, 3
      %p193 = pnand %p191, %p192
      %p194 = pneg %p193
      // Predicated region
      $region9: #{tpu_custom_call.1} parent=5 // pred_check
        _
      $region10: #{tpu_custom_call.1} parent=5 // pred_check_branch
        %196 = sbr.rel (%p193) target = $region12
      $region11: #{tpu_custom_call.1} parent=5 // pred_region
        %s197 = ssub.s32 %s17, 1
        // Predicated region
        $region13: #{tpu_custom_call.1} parent=11 // pred_check
          %p198 = pneg %p101
        $region14: #{tpu_custom_call.1} parent=11 // pred_check_branch
          %200 = sbr.rel (%p198) target = $region16
        $region15: #{tpu_custom_call.1} parent=11 // pred_region
          %s201 = smul.u32 16, %s31
          %s203 = ssub.s32 1024, 1024
          %204 = vsyncadd [#allocation7], %s203
          %s205 = sadd.s32 %s30, %s201
          %s206 = smul.addr %s205, 64
          %s207 = scalar_lea.hbm %s1, %s206
          %s208 = sshll.u32 [#allocation6], 4
          %s209 = int_to_ptr.vmem [resolvable:$true] %s208
          %214 = dma.hbm_to_vmem [thread:$0]  %s207, 1024, %s209, [#allocation7], 64, 64, 4
        $region16: #{tpu_custom_call.1} parent=11 // pred_fallthru
          _
        // Predicated region
        $region17: #{tpu_custom_call.1} parent=11 // pred_check
          %p215 = pneg %p127
        $region18: #{tpu_custom_call.1} parent=11 // pred_check_branch
          %217 = sbr.rel (%p215) target = $region20
        $region19: #{tpu_custom_call.1} parent=11 // pred_region
          %p218 = scmp.lt.s32.totalorder %s30, 0
          %s219 = scalar_select %p218, %s30, 0
          %s220 = scalar_lea.vmem %s2, %s219
        $region20: #{tpu_custom_call.1} parent=11 // pred_fallthru
          _
        // Predicated region
        $region21: #{tpu_custom_call.1} parent=11 // pred_check
          %p221 = pneg %p153
        $region22: #{tpu_custom_call.1} parent=11 // pred_check_branch
          %223 = sbr.rel (%p221) target = $region24
        $region23: #{tpu_custom_call.1} parent=11 // pred_region
          %p224 = scmp.lt.s32.totalorder %s30, 0
          %s225 = scalar_select %p224, %s30, 0
          %s226 = scalar_lea.vmem %s3, %s225
        $region24: #{tpu_custom_call.1} parent=11 // pred_fallthru
          _
      $region12: #{tpu_custom_call.1} parent=5 // pred_fallthru
        _
      %p227 = scmp.lt.s32.totalorder %s17, 2
      // Predicated region
      $region25: #{tpu_custom_call.1} parent=5 // pred_check
        %p228 = pneg %p227
      $region26: #{tpu_custom_call.1} parent=5 // pred_check_branch
        %230 = sbr.rel (%p228) target = $region28
      $region27: #{tpu_custom_call.1} parent=5 // pred_region
        // Predicated region
        $region29: #{tpu_custom_call.1} parent=27 // pred_check
          %p231 = pneg %p67
        $region30: #{tpu_custom_call.1} parent=27 // pred_check_branch
          %233 = sbr.rel (%p231) target = $region32
        $region31: #{tpu_custom_call.1} parent=27 // pred_region
          %s234 = sand.u32 %s57, 1
          %s235 = scalar_lea.sflag [#allocation4], %s234
          %s236 = sand.u32 %s57, 1
          %s237 = smul.addr %s236, 128
          %s238 = scalar_lea.vmem [#allocation3], %s237
          %s239 = smul.u32 32, %s25
          %s241 = ssub.s32 2048, 2048
          %242 = vsyncadd %s235, %s241
          %s243 = sadd.s32 %s27, %s239
          %s244 = smul.addr %s24, 32
          %s245 = sadd.s32 %s243, %s244
          %s246 = smul.addr %s245, 64
          %s247 = scalar_lea.hbm %s0, %s246
          %s248 = sshll.u32 %s238, 4
          %s249 = int_to_ptr.vmem [resolvable:$true] %s248
          %254 = dma.hbm_to_vmem [thread:$0]  %s247, 2048, %s249, %s235, 64, 64, 4
        $region32: #{tpu_custom_call.1} parent=27 // pred_fallthru
          _
      $region28: #{tpu_custom_call.1} parent=5 // pred_fallthru
        _
      %p255 = scmp.le.s32.totalorder 1, %s17
      %p256 = scmp.lt.s32.totalorder %s17, 3
      %p257 = pnand %p255, %p256
      %p258 = pneg %p257
      // Predicated region
      $region33: #{tpu_custom_call.1} parent=5 // pred_check
        _
      $region34: #{tpu_custom_call.1} parent=5 // pred_check_branch
        %260 = sbr.rel (%p257) target = $region36
      $region35: #{tpu_custom_call.1} parent=5 // pred_region
        %s261 = ssub.s32 %s17, 1
        %s262 = sand.u32 %s60, 1
        %s263 = scalar_lea.sflag [#allocation4], %s262
        %s264 = sand.u32 %s60, 1
        %s265 = smul.addr %s264, 128
        %s266 = scalar_lea.vmem [#allocation3], %s265
        // Predicated region
        $region37: #{tpu_custom_call.1} parent=35 // pred_check
          %p267 = pneg %p73
        $region38: #{tpu_custom_call.1} parent=35 // pred_check_branch
          %269 = sbr.rel (%p267) target = $region40
        $region39: #{tpu_custom_call.1} parent=35 // pred_region
          %270 = dma.done %s263, 2048
        $region40: #{tpu_custom_call.1} parent=35 // pred_fallthru
          _
        // Predicated region
        $region41: #{tpu_custom_call.1} parent=35 // pred_check
          %p271 = pneg %p101
        $region42: #{tpu_custom_call.1} parent=35 // pred_check_branch
          %273 = sbr.rel (%p271) target = $region44
        $region43: #{tpu_custom_call.1} parent=35 // pred_region
          %274 = dma.done [#allocation7], 1024
        $region44: #{tpu_custom_call.1} parent=35 // pred_fallthru
          _
        %s275 = sand.u32 %s60, 1
        %s276 = scalar_lea.sflag [#allocation4], %s275
        %s277 = sand.u32 %s60, 1
        %s278 = smul.addr %s277, 128
        %s279 = scalar_lea.vmem [#allocation3], %s278
        %p280 = pneg %p73
        %p281 = pneg %p70
        %p282 = pneg %p101
        %p283 = pneg %p98
        %p284 = scmp.lt.s32.totalorder %s30, 0
        %s285 = scalar_select %p284, %s30, 0
        %s286 = scalar_lea.vmem %s2, %s285
        %p287 = pneg %p127
        %p288 = pneg %p124
        %p289 = scmp.lt.s32.totalorder %s30, 0
        %s290 = scalar_select %p289, %s30, 0
        %s291 = scalar_lea.vmem %s3, %s290
        %p292 = pneg %p153
        %p293 = pneg %p150
        %p294 = pneg %p183
        %p295 = pneg %p180
        %s296 = sand.u32 %s170, 1
        %s297 = scalar_lea.sflag [#allocation5], %s296
        %s298 = sand.u32 %s170, 1
        %s299 = smul.addr %s298, 128
        %s300 = scalar_lea.vmem [#allocation8], %s299
        %s301 = smul.u32 32, %s29
        %s302 = smul.u32 16, %s31
        %p303 = scmp.lt.s32.totalorder %s30, 0
        %s304 = scalar_select %p303, %s30, 0
        %s305 = scalar_lea.vmem %s2, %s304
        %p306 = scmp.lt.s32.totalorder %s30, 0
        %s307 = scalar_select %p306, %s30, 0
        %s308 = scalar_lea.vmem %s3, %s307
        %s309 = smul.u32 32, %s29
        %p311 = scmp.eq.s32.totalorder %s31, 0
        // Predicated region
        $region45: #{tpu_custom_call.1} parent=35 // pred_check
          %p312 = pneg %p311
        $region46: #{tpu_custom_call.1} parent=35 // pred_check_branch
          %314 = sbr.rel (%p312) target = $region48
        $region47: #{tpu_custom_call.1} parent=35 // pred_region
          %315 = vst [vmem:[#allocation2] sm:$0xff] 0.0
          %316 = vst [vmem:[#allocation2 + $0x8] sm:$0xff] 0.0
          %317 = vst [vmem:[#allocation2 + $0x10] sm:$0xff] 0.0
          %318 = vst [vmem:[#allocation2 + $0x18] sm:$0xff] 0.0
          %319 = vst [vmem:[#allocation2 + $0x20] sm:$0xff] 0.0
          %320 = vst [vmem:[#allocation2 + $0x28] sm:$0xff] 0.0
          %321 = vst [vmem:[#allocation2 + $0x30] sm:$0xff] 0.0
          %322 = vst [vmem:[#allocation2 + $0x38] sm:$0xff] 0.0
          %323 = vst [vmem:[#allocation2 + $0x40] sm:$0xff] 0.0
          %324 = vst [vmem:[#allocation2 + $0x48] sm:$0xff] 0.0
          %325 = vst [vmem:[#allocation2 + $0x50] sm:$0xff] 0.0
          %326 = vst [vmem:[#allocation2 + $0x58] sm:$0xff] 0.0
          %327 = vst [vmem:[#allocation2 + $0x60] sm:$0xff] 0.0
          %328 = vst [vmem:[#allocation2 + $0x68] sm:$0xff] 0.0
          %329 = vst [vmem:[#allocation2 + $0x70] sm:$0xff] 0.0
          %330 = vst [vmem:[#allocation2 + $0x78] sm:$0xff] 0.0
          %331 = vst [vmem:[#allocation2 + $0x80] sm:$0xff] 0.0
          %332 = vst [vmem:[#allocation2 + $0x88] sm:$0xff] 0.0
          %333 = vst [vmem:[#allocation2 + $0x90] sm:$0xff] 0.0
          %334 = vst [vmem:[#allocation2 + $0x98] sm:$0xff] 0.0
          %335 = vst [vmem:[#allocation2 + $0xa0] sm:$0xff] 0.0
          %336 = vst [vmem:[#allocation2 + $0xa8] sm:$0xff] 0.0
          %337 = vst [vmem:[#allocation2 + $0xb0] sm:$0xff] 0.0
          %338 = vst [vmem:[#allocation2 + $0xb8] sm:$0xff] 0.0
          %339 = vst [vmem:[#allocation2 + $0xc0] sm:$0xff] 0.0
          %340 = vst [vmem:[#allocation2 + $0xc8] sm:$0xff] 0.0
          %341 = vst [vmem:[#allocation2 + $0xd0] sm:$0xff] 0.0
          %342 = vst [vmem:[#allocation2 + $0xd8] sm:$0xff] 0.0
          %343 = vst [vmem:[#allocation2 + $0xe0] sm:$0xff] 0.0
          %344 = vst [vmem:[#allocation2 + $0xe8] sm:$0xff] 0.0
          %345 = vst [vmem:[#allocation2 + $0xf0] sm:$0xff] 0.0
          %346 = vst [vmem:[#allocation2 + $0xf8] sm:$0xff] 0.0
        $region48: #{tpu_custom_call.1} parent=35 // pred_fallthru
          _
        %v347 = vld [vmem:[#allocation2] sm:$0xff]
        %v348 = vld [vmem:[#allocation2 + $0x8] sm:$0xff]
        %v349 = vld [vmem:[#allocation2 + $0x10] sm:$0xff]
        %v350 = vld [vmem:[#allocation2 + $0x18] sm:$0xff]
        %v351 = vld [vmem:[#allocation2 + $0x20] sm:$0xff]
        %v352 = vld [vmem:[#allocation2 + $0x28] sm:$0xff]
        %v353 = vld [vmem:[#allocation2 + $0x30] sm:$0xff]
        %v354 = vld [vmem:[#allocation2 + $0x38] sm:$0xff]
        %v355 = vld [vmem:[#allocation2 + $0x40] sm:$0xff]
        %v356 = vld [vmem:[#allocation2 + $0x48] sm:$0xff]
        %v357 = vld [vmem:[#allocation2 + $0x50] sm:$0xff]
        %v358 = vld [vmem:[#allocation2 + $0x58] sm:$0xff]
        %v359 = vld [vmem:[#allocation2 + $0x60] sm:$0xff]
        %v360 = vld [vmem:[#allocation2 + $0x68] sm:$0xff]
        %v361 = vld [vmem:[#allocation2 + $0x70] sm:$0xff]
        %v362 = vld [vmem:[#allocation2 + $0x78] sm:$0xff]
        %v363 = vld [vmem:[#allocation2 + $0x80] sm:$0xff]
        %v364 = vld [vmem:[#allocation2 + $0x88] sm:$0xff]
        %v365 = vld [vmem:[#allocation2 + $0x90] sm:$0xff]
        %v366 = vld [vmem:[#allocation2 + $0x98] sm:$0xff]
        %v367 = vld [vmem:[#allocation2 + $0xa0] sm:$0xff]
        %v368 = vld [vmem:[#allocation2 + $0xa8] sm:$0xff]
        %v369 = vld [vmem:[#allocation2 + $0xb0] sm:$0xff]
        %v370 = vld [vmem:[#allocation2 + $0xb8] sm:$0xff]
        %v371 = vld [vmem:[#allocation2 + $0xc0] sm:$0xff]
        %v372 = vld [vmem:[#allocation2 + $0xc8] sm:$0xff]
        %v373 = vld [vmem:[#allocation2 + $0xd0] sm:$0xff]
        %v374 = vld [vmem:[#allocation2 + $0xd8] sm:$0xff]
        %v375 = vld [vmem:[#allocation2 + $0xe0] sm:$0xff]
        %v376 = vld [vmem:[#allocation2 + $0xe8] sm:$0xff]
        %v377 = vld [vmem:[#allocation2 + $0xf0] sm:$0xff]
        %v378 = vld [vmem:[#allocation2 + $0xf8] sm:$0xff]
        %v379 = vld [vmem:[%s266] sm:$0xf]
        %v380 = vld [vmem:[%s266 + $0x4] sm:$0xf]
        %v381 = vld [vmem:[%s266 + $0x8] sm:$0xf]
        %v382 = vld [vmem:[%s266 + $0xc] sm:$0xf]
        %v383 = vld [vmem:[%s266 + $0x10] sm:$0xf]
        %v384 = vld [vmem:[%s266 + $0x14] sm:$0xf]
        %v385 = vld [vmem:[%s266 + $0x18] sm:$0xf]
        %v386 = vld [vmem:[%s266 + $0x1c] sm:$0xf]
        %v387 = vld [vmem:[%s266 + $0x20] sm:$0xf]
        %v388 = vld [vmem:[%s266 + $0x24] sm:$0xf]
        %v389 = vld [vmem:[%s266 + $0x28] sm:$0xf]
        %v390 = vld [vmem:[%s266 + $0x2c] sm:$0xf]
        %v391 = vld [vmem:[%s266 + $0x30] sm:$0xf]
        %v392 = vld [vmem:[%s266 + $0x34] sm:$0xf]
        %v393 = vld [vmem:[%s266 + $0x38] sm:$0xf]
        %v394 = vld [vmem:[%s266 + $0x3c] sm:$0xf]
        %v395 = vld [vmem:[%s266 + $0x40] sm:$0xf]
        %v396 = vld [vmem:[%s266 + $0x44] sm:$0xf]
        %v397 = vld [vmem:[%s266 + $0x48] sm:$0xf]
        %v398 = vld [vmem:[%s266 + $0x4c] sm:$0xf]
        %v399 = vld [vmem:[%s266 + $0x50] sm:$0xf]
        %v400 = vld [vmem:[%s266 + $0x54] sm:$0xf]
        %v401 = vld [vmem:[%s266 + $0x58] sm:$0xf]
        %v402 = vld [vmem:[%s266 + $0x5c] sm:$0xf]
        %v403 = vld [vmem:[%s266 + $0x60] sm:$0xf]
        %v404 = vld [vmem:[%s266 + $0x64] sm:$0xf]
        %v405 = vld [vmem:[%s266 + $0x68] sm:$0xf]
        %v406 = vld [vmem:[%s266 + $0x6c] sm:$0xf]
        %v407 = vld [vmem:[%s266 + $0x70] sm:$0xf]
        %v408 = vld [vmem:[%s266 + $0x74] sm:$0xf]
        %v409 = vld [vmem:[%s266 + $0x78] sm:$0xf]
        %v410 = vld [vmem:[%s266 + $0x7c] sm:$0xf]
        %v411 = vld [vmem:[#allocation6] sm:$0xf]
        %v412 = vld [vmem:[#allocation6 + $0x4] sm:$0xf]
        %v413 = vld [vmem:[#allocation6 + $0x8] sm:$0xf]
        %v414 = vld [vmem:[#allocation6 + $0xc] sm:$0xf]
        %v415 = vld [vmem:[#allocation6 + $0x10] sm:$0xf]
        %v416 = vld [vmem:[#allocation6 + $0x14] sm:$0xf]
        %v417 = vld [vmem:[#allocation6 + $0x18] sm:$0xf]
        %v418 = vld [vmem:[#allocation6 + $0x1c] sm:$0xf]
        %v419 = vld [vmem:[#allocation6 + $0x20] sm:$0xf]
        %v420 = vld [vmem:[#allocation6 + $0x24] sm:$0xf]
        %v421 = vld [vmem:[#allocation6 + $0x28] sm:$0xf]
        %v422 = vld [vmem:[#allocation6 + $0x2c] sm:$0xf]
        %v423 = vld [vmem:[#allocation6 + $0x30] sm:$0xf]
        %v424 = vld [vmem:[#allocation6 + $0x34] sm:$0xf]
        %v425 = vld [vmem:[#allocation6 + $0x38] sm:$0xf]
        %v426 = vld [vmem:[#allocation6 + $0x3c] sm:$0xf]
        %v459 = vunpack.c.l.b16 %v379
        %v460 = vunpack.c.l.b16 %v380
        %v461 = vunpack.c.l.b16 %v381
        %v462 = vunpack.c.l.b16 %v382
        %v463 = vunpack.c.l.b16 %v383
        %v464 = vunpack.c.l.b16 %v384
        %v465 = vunpack.c.l.b16 %v385
        %v466 = vunpack.c.l.b16 %v386
        %v467 = vunpack.c.l.b16 %v387
        %v468 = vunpack.c.l.b16 %v388
        %v469 = vunpack.c.l.b16 %v389
        %v470 = vunpack.c.l.b16 %v390
        %v471 = vunpack.c.l.b16 %v391
        %v472 = vunpack.c.l.b16 %v392
        %v473 = vunpack.c.l.b16 %v393
        %v474 = vunpack.c.l.b16 %v394
        %v475 = vunpack.c.l.b16 %v395
        %v476 = vunpack.c.l.b16 %v396
        %v477 = vunpack.c.l.b16 %v397
        %v478 = vunpack.c.l.b16 %v398
        %v479 = vunpack.c.l.b16 %v399
        %v480 = vunpack.c.l.b16 %v400
        %v481 = vunpack.c.l.b16 %v401
        %v482 = vunpack.c.l.b16 %v402
        %v483 = vunpack.c.l.b16 %v403
        %v484 = vunpack.c.l.b16 %v404
        %v485 = vunpack.c.l.b16 %v405
        %v486 = vunpack.c.l.b16 %v406
        %v487 = vunpack.c.l.b16 %v407
        %v488 = vunpack.c.l.b16 %v408
        %v489 = vunpack.c.l.b16 %v409
        %v490 = vunpack.c.l.b16 %v410
        %v491 = vpack.c.b16 %v460, %v459
        %v492 = vpack.c.b16 %v462, %v461
        %v493 = vpack.c.b16 %v464, %v463
        %v494 = vpack.c.b16 %v466, %v465
        %v495 = vpack.c.b16 %v468, %v467
        %v496 = vpack.c.b16 %v470, %v469
        %v497 = vpack.c.b16 %v472, %v471
        %v498 = vpack.c.b16 %v474, %v473
        %v499 = vpack.c.b16 %v476, %v475
        %v500 = vpack.c.b16 %v478, %v477
        %v501 = vpack.c.b16 %v480, %v479
        %v502 = vpack.c.b16 %v482, %v481
        %v503 = vpack.c.b16 %v484, %v483
        %v504 = vpack.c.b16 %v486, %v485
        %v505 = vpack.c.b16 %v488, %v487
        %v506 = vpack.c.b16 %v490, %v489
        %v539 = vunpack.c.l.b16 %v411
        %v540 = vunpack.c.l.b16 %v412
        %v541 = vunpack.c.l.b16 %v413
        %v542 = vunpack.c.l.b16 %v414
        %v543 = vunpack.c.l.b16 %v415
        %v544 = vunpack.c.l.b16 %v416
        %v545 = vunpack.c.l.b16 %v417
        %v546 = vunpack.c.l.b16 %v418
        %v547 = vunpack.c.l.b16 %v419
        %v548 = vunpack.c.l.b16 %v420
        %v549 = vunpack.c.l.b16 %v421
        %v550 = vunpack.c.l.b16 %v422
        %v551 = vunpack.c.l.b16 %v423
        %v552 = vunpack.c.l.b16 %v424
        %v553 = vunpack.c.l.b16 %v425
        %v554 = vunpack.c.l.b16 %v426
        %v555 = vpack.c.b16 %v540, %v539
        %v556 = vpack.c.b16 %v542, %v541
        %v557 = vpack.c.b16 %v544, %v543
        %v558 = vpack.c.b16 %v546, %v545
        %v559 = vpack.c.b16 %v548, %v547
        %v560 = vpack.c.b16 %v550, %v549
        %v561 = vpack.c.b16 %v552, %v551
        %v562 = vpack.c.b16 %v554, %v553
        %571 = vmatprep.subr.bf16.mxu0 0
        %572 = vmatpush1.bf16.msra.mxu0 %v555
        %573 = vmatprep.subr.bf16.mxu0 0
        %574 = vmatpush1.bf16.msra.mxu0 %v556
        %575 = vmatprep.subr.bf16.mxu0 0
        %576 = vmatpush1.bf16.msra.mxu0 %v557
        %577 = vmatprep.subr.bf16.mxu0 0
        %578 = vmatpush1.bf16.msra.mxu0 %v558
        %579 = vmatprep.subr.bf16.mxu0 0
        %580 = vmatpush1.bf16.msra.mxu0 %v559
        %581 = vmatprep.subr.bf16.mxu0 0
        %582 = vmatpush1.bf16.msra.mxu0 %v560
        %583 = vmatprep.subr.bf16.mxu0 0
        %584 = vmatpush1.bf16.msra.mxu0 %v561
        %585 = vmatprep.subr.bf16.mxu0 0
        %586 = vmatpush1.bf16.msra.mxu0 %v562
        %587 = vmatprep.subr.bf16.mxu0 0
        %588 = vmatpush1.bf16.msra.mxu0 0
        %589 = vmatprep.subr.bf16.mxu0 0
        %590 = vmatpush1.bf16.msra.mxu0 0
        %591 = vmatprep.subr.bf16.mxu0 0
        %592 = vmatpush1.bf16.msra.mxu0 0
        %593 = vmatprep.subr.bf16.mxu0 0
        %594 = vmatpush1.bf16.msra.mxu0 0
        %595 = vmatprep.subr.bf16.mxu0 0
        %596 = vmatpush1.bf16.msra.mxu0 0
        %597 = vmatprep.subr.bf16.mxu0 0
        %598 = vmatpush1.bf16.msra.mxu0 0
        %599 = vmatprep.subr.bf16.mxu0 0
        %600 = vmatpush1.bf16.msra.mxu0 0
        %601 = vmatprep.subr.bf16.mxu0 0
        %602 = vmatpush1.bf16.msra.mxu0 0
        %603 = vmatprep.mubr.bf16.mxu0 0
        %604 = vmatmul.mubr.bf16.gmra.mrb[0].mxu0 %v491
        %v605 = vpop.f32.mrb[0].mxu0
        %v606 = vadd.f32 0.0, %v605
        %v607 = vpop.f32.mrb[0].mxu0
        %v608 = vpop.f32.mrb[0].mxu0
        %v609 = vadd.f32 0.0, %v608
        %v610 = vpop.f32.mrb[0].mxu0
        %611 = vmatprep.mubr.bf16.mxu0 0
        %612 = vmatmul.mubr.bf16.gmra.mrb[0].mxu0 %v492
        %v613 = vpop.f32.mrb[0].mxu0
        %v614 = vadd.f32 0.0, %v613
        %v615 = vpop.f32.mrb[0].mxu0
        %v616 = vpop.f32.mrb[0].mxu0
        %v617 = vadd.f32 0.0, %v616
        %v618 = vpop.f32.mrb[0].mxu0
        %619 = vmatprep.mubr.bf16.mxu0 0
        %620 = vmatmul.mubr.bf16.gmra.mrb[0].mxu0 %v493
        %v621 = vpop.f32.mrb[0].mxu0
        %v622 = vadd.f32 0.0, %v621
        %v623 = vpop.f32.mrb[0].mxu0
        %v624 = vpop.f32.mrb[0].mxu0
        %v625 = vadd.f32 0.0, %v624
        %v626 = vpop.f32.mrb[0].mxu0
        %627 = vmatprep.mubr.bf16.mxu0 0
        %628 = vmatmul.mubr.bf16.gmra.mrb[0].mxu0 %v494
        %v629 = vpop.f32.mrb[0].mxu0
        %v630 = vadd.f32 0.0, %v629
        %v631 = vpop.f32.mrb[0].mxu0
        %v632 = vpop.f32.mrb[0].mxu0
        %v633 = vadd.f32 0.0, %v632
        %v634 = vpop.f32.mrb[0].mxu0
        %635 = vmatprep.mubr.bf16.mxu0 0
        %636 = vmatmul.mubr.bf16.gmra.mrb[0].mxu0 %v495
        %v637 = vpop.f32.mrb[0].mxu0
        %v638 = vadd.f32 0.0, %v637
        %v639 = vpop.f32.mrb[0].mxu0
        %v640 = vpop.f32.mrb[0].mxu0
        %v641 = vadd.f32 0.0, %v640
        %v642 = vpop.f32.mrb[0].mxu0
        %643 = vmatprep.mubr.bf16.mxu0 0
        %644 = vmatmul.mubr.bf16.gmra.mrb[0].mxu0 %v496
        %v645 = vpop.f32.mrb[0].mxu0
        %v646 = vadd.f32 0.0, %v645
        %v647 = vpop.f32.mrb[0].mxu0
        %v648 = vpop.f32.mrb[0].mxu0
        %v649 = vadd.f32 0.0, %v648
        %v650 = vpop.f32.mrb[0].mxu0
        %651 = vmatprep.mubr.bf16.mxu0 0
        %652 = vmatmul.mubr.bf16.gmra.mrb[0].mxu0 %v497
        %v653 = vpop.f32.mrb[0].mxu0
        %v654 = vadd.f32 0.0, %v653
        %v655 = vpop.f32.mrb[0].mxu0
        %v656 = vpop.f32.mrb[0].mxu0
        %v657 = vadd.f32 0.0, %v656
        %v658 = vpop.f32.mrb[0].mxu0
        %659 = vmatprep.mubr.bf16.mxu0 0
        %660 = vmatmul.mubr.bf16.gmra.mrb[0].mxu0 %v498
        %v661 = vpop.f32.mrb[0].mxu0
        %v662 = vadd.f32 0.0, %v661
        %v663 = vpop.f32.mrb[0].mxu0
        %v664 = vpop.f32.mrb[0].mxu0
        %v665 = vadd.f32 0.0, %v664
        %v666 = vpop.f32.mrb[0].mxu0
        %667 = vmatprep.mubr.bf16.mxu0 0
        %668 = vmatmul.mubr.bf16.gmra.mrb[0].mxu0 %v499
        %v669 = vpop.f32.mrb[0].mxu0
        %v670 = vadd.f32 0.0, %v669
        %v671 = vpop.f32.mrb[0].mxu0
        %v672 = vpop.f32.mrb[0].mxu0
        %v673 = vadd.f32 0.0, %v672
        %v674 = vpop.f32.mrb[0].mxu0
        %675 = vmatprep.mubr.bf16.mxu0 0
        %676 = vmatmul.mubr.bf16.gmra.mrb[0].mxu0 %v500
        %v677 = vpop.f32.mrb[0].mxu0
        %v678 = vadd.f32 0.0, %v677
        %v679 = vpop.f32.mrb[0].mxu0
        %v680 = vpop.f32.mrb[0].mxu0
        %v681 = vadd.f32 0.0, %v680
        %v682 = vpop.f32.mrb[0].mxu0
        %683 = vmatprep.mubr.bf16.mxu0 0
        %684 = vmatmul.mubr.bf16.gmra.mrb[0].mxu0 %v501
        %v685 = vpop.f32.mrb[0].mxu0
        %v686 = vadd.f32 0.0, %v685
        %v687 = vpop.f32.mrb[0].mxu0
        %v688 = vpop.f32.mrb[0].mxu0
        %v689 = vadd.f32 0.0, %v688
        %v690 = vpop.f32.mrb[0].mxu0
        %691 = vmatprep.mubr.bf16.mxu0 0
        %692 = vmatmul.mubr.bf16.gmra.mrb[0].mxu0 %v502
        %v693 = vpop.f32.mrb[0].mxu0
        %v694 = vadd.f32 0.0, %v693
        %v695 = vpop.f32.mrb[0].mxu0
        %v696 = vpop.f32.mrb[0].mxu0
        %v697 = vadd.f32 0.0, %v696
        %v698 = vpop.f32.mrb[0].mxu0
        %699 = vmatprep.mubr.bf16.mxu0 0
        %700 = vmatmul.mubr.bf16.gmra.mrb[0].mxu0 %v503
        %v701 = vpop.f32.mrb[0].mxu0
        %v702 = vadd.f32 0.0, %v701
        %v703 = vpop.f32.mrb[0].mxu0
        %v704 = vpop.f32.mrb[0].mxu0
        %v705 = vadd.f32 0.0, %v704
        %v706 = vpop.f32.mrb[0].mxu0
        %707 = vmatprep.mubr.bf16.mxu0 0
        %708 = vmatmul.mubr.bf16.gmra.mrb[0].mxu0 %v504
        %v709 = vpop.f32.mrb[0].mxu0
        %v710 = vadd.f32 0.0, %v709
        %v711 = vpop.f32.mrb[0].mxu0
        %v712 = vpop.f32.mrb[0].mxu0
        %v713 = vadd.f32 0.0, %v712
        %v714 = vpop.f32.mrb[0].mxu0
        %715 = vmatprep.mubr.bf16.mxu0 0
        %716 = vmatmul.mubr.bf16.gmra.mrb[0].mxu0 %v505
        %v717 = vpop.f32.mrb[0].mxu0
        %v718 = vadd.f32 0.0, %v717
        %v719 = vpop.f32.mrb[0].mxu0
        %v720 = vpop.f32.mrb[0].mxu0
        %v721 = vadd.f32 0.0, %v720
        %v722 = vpop.f32.mrb[0].mxu0
        %723 = vmatprep.mubr.bf16.mxu0 0
        %724 = vmatmul.mubr.bf16.gmra.mrb[0].mxu0 %v506
        %v725 = vpop.f32.mrb[0].mxu0
        %v726 = vadd.f32 0.0, %v725
        %v727 = vpop.f32.mrb[0].mxu0
        %v728 = vpop.f32.mrb[0].mxu0
        %v729 = vadd.f32 0.0, %v728
        %v730 = vpop.f32.mrb[0].mxu0
        %731 = vdwg.mxu0
        %v732 = vadd.f32 %v347, %v606
        %v733 = vadd.f32 %v348, %v609
        %v734 = vadd.f32 %v349, %v614
        %v735 = vadd.f32 %v350, %v617
        %v736 = vadd.f32 %v351, %v622
        %v737 = vadd.f32 %v352, %v625
        %v738 = vadd.f32 %v353, %v630
        %v739 = vadd.f32 %v354, %v633
        %v740 = vadd.f32 %v355, %v638
        %v741 = vadd.f32 %v356, %v641
        %v742 = vadd.f32 %v357, %v646
        %v743 = vadd.f32 %v358, %v649
        %v744 = vadd.f32 %v359, %v654
        %v745 = vadd.f32 %v360, %v657
        %v746 = vadd.f32 %v361, %v662
        %v747 = vadd.f32 %v362, %v665
        %v748 = vadd.f32 %v363, %v670
        %v749 = vadd.f32 %v364, %v673
        %v750 = vadd.f32 %v365, %v678
        %v751 = vadd.f32 %v366, %v681
        %v752 = vadd.f32 %v367, %v686
        %v753 = vadd.f32 %v368, %v689
        %v754 = vadd.f32 %v369, %v694
        %v755 = vadd.f32 %v370, %v697
        %v756 = vadd.f32 %v371, %v702
        %v757 = vadd.f32 %v372, %v705
        %v758 = vadd.f32 %v373, %v710
        %v759 = vadd.f32 %v374, %v713
        %v760 = vadd.f32 %v375, %v718
        %v761 = vadd.f32 %v376, %v721
        %v762 = vadd.f32 %v377, %v726
        %v763 = vadd.f32 %v378, %v729
        %764 = vst [vmem:[#allocation2] sm:$0xff] %v732
        %765 = vst [vmem:[#allocation2 + $0x8] sm:$0xff] %v733
        %766 = vst [vmem:[#allocation2 + $0x10] sm:$0xff] %v734
        %767 = vst [vmem:[#allocation2 + $0x18] sm:$0xff] %v735
        %768 = vst [vmem:[#allocation2 + $0x20] sm:$0xff] %v736
        %769 = vst [vmem:[#allocation2 + $0x28] sm:$0xff] %v737
        %770 = vst [vmem:[#allocation2 + $0x30] sm:$0xff] %v738
        %771 = vst [vmem:[#allocation2 + $0x38] sm:$0xff] %v739
        %772 = vst [vmem:[#allocation2 + $0x40] sm:$0xff] %v740
        %773 = vst [vmem:[#allocation2 + $0x48] sm:$0xff] %v741
        %774 = vst [vmem:[#allocation2 + $0x50] sm:$0xff] %v742
        %775 = vst [vmem:[#allocation2 + $0x58] sm:$0xff] %v743
        %776 = vst [vmem:[#allocation2 + $0x60] sm:$0xff] %v744
        %777 = vst [vmem:[#allocation2 + $0x68] sm:$0xff] %v745
        %778 = vst [vmem:[#allocation2 + $0x70] sm:$0xff] %v746
        %779 = vst [vmem:[#allocation2 + $0x78] sm:$0xff] %v747
        %780 = vst [vmem:[#allocation2 + $0x80] sm:$0xff] %v748
        %781 = vst [vmem:[#allocation2 + $0x88] sm:$0xff] %v749
        %782 = vst [vmem:[#allocation2 + $0x90] sm:$0xff] %v750
        %783 = vst [vmem:[#allocation2 + $0x98] sm:$0xff] %v751
        %784 = vst [vmem:[#allocation2 + $0xa0] sm:$0xff] %v752
        %785 = vst [vmem:[#allocation2 + $0xa8] sm:$0xff] %v753
        %786 = vst [vmem:[#allocation2 + $0xb0] sm:$0xff] %v754
        %787 = vst [vmem:[#allocation2 + $0xb8] sm:$0xff] %v755
        %788 = vst [vmem:[#allocation2 + $0xc0] sm:$0xff] %v756
        %789 = vst [vmem:[#allocation2 + $0xc8] sm:$0xff] %v757
        %790 = vst [vmem:[#allocation2 + $0xd0] sm:$0xff] %v758
        %791 = vst [vmem:[#allocation2 + $0xd8] sm:$0xff] %v759
        %792 = vst [vmem:[#allocation2 + $0xe0] sm:$0xff] %v760
        %793 = vst [vmem:[#allocation2 + $0xe8] sm:$0xff] %v761
        %794 = vst [vmem:[#allocation2 + $0xf0] sm:$0xff] %v762
        %795 = vst [vmem:[#allocation2 + $0xf8] sm:$0xff] %v763
        // Predicated region
        $region49: #{tpu_custom_call.1} parent=35 // pred_check
          %p796 = pneg %p311
        $region50: #{tpu_custom_call.1} parent=35 // pred_check_branch
          %798 = sbr.rel (%p796) target = $region52
        $region51: #{tpu_custom_call.1} parent=35 // pred_region
          %v799 = vld [vmem:[#allocation2] sm:$0xff]
          %v800 = vld [vmem:[#allocation2 + $0x8] sm:$0xff]
          %v801 = vld [vmem:[#allocation2 + $0x10] sm:$0xff]
          %v802 = vld [vmem:[#allocation2 + $0x18] sm:$0xff]
          %v803 = vld [vmem:[#allocation2 + $0x20] sm:$0xff]
          %v804 = vld [vmem:[#allocation2 + $0x28] sm:$0xff]
          %v805 = vld [vmem:[#allocation2 + $0x30] sm:$0xff]
          %v806 = vld [vmem:[#allocation2 + $0x38] sm:$0xff]
          %v807 = vld [vmem:[#allocation2 + $0x40] sm:$0xff]
          %v808 = vld [vmem:[#allocation2 + $0x48] sm:$0xff]
          %v809 = vld [vmem:[#allocation2 + $0x50] sm:$0xff]
          %v810 = vld [vmem:[#allocation2 + $0x58] sm:$0xff]
          %v811 = vld [vmem:[#allocation2 + $0x60] sm:$0xff]
          %v812 = vld [vmem:[#allocation2 + $0x68] sm:$0xff]
          %v813 = vld [vmem:[#allocation2 + $0x70] sm:$0xff]
          %v814 = vld [vmem:[#allocation2 + $0x78] sm:$0xff]
          %v815 = vld [vmem:[#allocation2 + $0x80] sm:$0xff]
          %v816 = vld [vmem:[#allocation2 + $0x88] sm:$0xff]
          %v817 = vld [vmem:[#allocation2 + $0x90] sm:$0xff]
          %v818 = vld [vmem:[#allocation2 + $0x98] sm:$0xff]
          %v819 = vld [vmem:[#allocation2 + $0xa0] sm:$0xff]
          %v820 = vld [vmem:[#allocation2 + $0xa8] sm:$0xff]
          %v821 = vld [vmem:[#allocation2 + $0xb0] sm:$0xff]
          %v822 = vld [vmem:[#allocation2 + $0xb8] sm:$0xff]
          %v823 = vld [vmem:[#allocation2 + $0xc0] sm:$0xff]
          %v824 = vld [vmem:[#allocation2 + $0xc8] sm:$0xff]
          %v825 = vld [vmem:[#allocation2 + $0xd0] sm:$0xff]
          %v826 = vld [vmem:[#allocation2 + $0xd8] sm:$0xff]
          %v827 = vld [vmem:[#allocation2 + $0xe0] sm:$0xff]
          %v828 = vld [vmem:[#allocation2 + $0xe8] sm:$0xff]
          %v829 = vld [vmem:[#allocation2 + $0xf0] sm:$0xff]
          %v830 = vld [vmem:[#allocation2 + $0xf8] sm:$0xff]
          %v831 = vld [vmem:[%s305] sm:$0x1]
          %v833 = vlaneseq
          %v834 = vshrl.u32 %v833, 7
          %v835 = vsub.s32 0, %v834
          %v836 = vrot.slane %v831, %v835
          %v838 = vmul.f32 %v799, %v836
          %v839 = vmul.f32 %v800, %v836
          %v840 = vmul.f32 %v801, %v836
          %v841 = vmul.f32 %v802, %v836
          %v842 = vmul.f32 %v803, %v836
          %v843 = vmul.f32 %v804, %v836
          %v844 = vmul.f32 %v805, %v836
          %v845 = vmul.f32 %v806, %v836
          %v846 = vmul.f32 %v807, %v836
          %v847 = vmul.f32 %v808, %v836
          %v848 = vmul.f32 %v809, %v836
          %v849 = vmul.f32 %v810, %v836
          %v850 = vmul.f32 %v811, %v836
          %v851 = vmul.f32 %v812, %v836
          %v852 = vmul.f32 %v813, %v836
          %v853 = vmul.f32 %v814, %v836
          %v854 = vmul.f32 %v815, %v836
          %v855 = vmul.f32 %v816, %v836
          %v856 = vmul.f32 %v817, %v836
          %v857 = vmul.f32 %v818, %v836
          %v858 = vmul.f32 %v819, %v836
          %v859 = vmul.f32 %v820, %v836
          %v860 = vmul.f32 %v821, %v836
          %v861 = vmul.f32 %v822, %v836
          %v862 = vmul.f32 %v823, %v836
          %v863 = vmul.f32 %v824, %v836
          %v864 = vmul.f32 %v825, %v836
          %v865 = vmul.f32 %v826, %v836
          %v866 = vmul.f32 %v827, %v836
          %v867 = vmul.f32 %v828, %v836
          %v868 = vmul.f32 %v829, %v836
          %v869 = vmul.f32 %v830, %v836
          %v870 = vld [vmem:[%s308] sm:$0x1]
          %v872 = vlaneseq
          %v873 = vshrl.u32 %v872, 7
          %v874 = vsub.s32 0, %v873
          %v875 = vrot.slane %v870, %v874
          %v877 = vadd.f32 %v838, %v875
          %v878 = vadd.f32 %v839, %v875
          %v879 = vadd.f32 %v840, %v875
          %v880 = vadd.f32 %v841, %v875
          %v881 = vadd.f32 %v842, %v875
          %v882 = vadd.f32 %v843, %v875
          %v883 = vadd.f32 %v844, %v875
          %v884 = vadd.f32 %v845, %v875
          %v885 = vadd.f32 %v846, %v875
          %v886 = vadd.f32 %v847, %v875
          %v887 = vadd.f32 %v848, %v875
          %v888 = vadd.f32 %v849, %v875
          %v889 = vadd.f32 %v850, %v875
          %v890 = vadd.f32 %v851, %v875
          %v891 = vadd.f32 %v852, %v875
          %v892 = vadd.f32 %v853, %v875
          %v893 = vadd.f32 %v854, %v875
          %v894 = vadd.f32 %v855, %v875
          %v895 = vadd.f32 %v856, %v875
          %v896 = vadd.f32 %v857, %v875
          %v897 = vadd.f32 %v858, %v875
          %v898 = vadd.f32 %v859, %v875
          %v899 = vadd.f32 %v860, %v875
          %v900 = vadd.f32 %v861, %v875
          %v901 = vadd.f32 %v862, %v875
          %v902 = vadd.f32 %v863, %v875
          %v903 = vadd.f32 %v864, %v875
          %v904 = vadd.f32 %v865, %v875
          %v905 = vadd.f32 %v866, %v875
          %v906 = vadd.f32 %v867, %v875
          %v907 = vadd.f32 %v868, %v875
          %v908 = vadd.f32 %v869, %v875
          %v909 = vmax.f32 %v877, 0.0
          %v910 = vmax.f32 %v878, 0.0
          %v911 = vmax.f32 %v879, 0.0
          %v912 = vmax.f32 %v880, 0.0
          %v913 = vmax.f32 %v881, 0.0
          %v914 = vmax.f32 %v882, 0.0
          %v915 = vmax.f32 %v883, 0.0
          %v916 = vmax.f32 %v884, 0.0
          %v917 = vmax.f32 %v885, 0.0
          %v918 = vmax.f32 %v886, 0.0
          %v919 = vmax.f32 %v887, 0.0
          %v920 = vmax.f32 %v888, 0.0
          %v921 = vmax.f32 %v889, 0.0
          %v922 = vmax.f32 %v890, 0.0
          %v923 = vmax.f32 %v891, 0.0
          %v924 = vmax.f32 %v892, 0.0
          %v925 = vmax.f32 %v893, 0.0
          %v926 = vmax.f32 %v894, 0.0
          %v927 = vmax.f32 %v895, 0.0
          %v928 = vmax.f32 %v896, 0.0
          %v929 = vmax.f32 %v897, 0.0
          %v930 = vmax.f32 %v898, 0.0
          %v931 = vmax.f32 %v899, 0.0
          %v932 = vmax.f32 %v900, 0.0
          %v933 = vmax.f32 %v901, 0.0
          %v934 = vmax.f32 %v902, 0.0
          %v935 = vmax.f32 %v903, 0.0
          %v936 = vmax.f32 %v904, 0.0
          %v937 = vmax.f32 %v905, 0.0
          %v938 = vmax.f32 %v906, 0.0
          %v939 = vmax.f32 %v907, 0.0
          %v940 = vmax.f32 %v908, 0.0
          %v941 = vpack.c.bf16 %v910, %v909
          %v942 = vpack.c.bf16 %v912, %v911
          %v943 = vpack.c.bf16 %v914, %v913
          %v944 = vpack.c.bf16 %v916, %v915
          %v945 = vpack.c.bf16 %v918, %v917
          %v946 = vpack.c.bf16 %v920, %v919
          %v947 = vpack.c.bf16 %v922, %v921
          %v948 = vpack.c.bf16 %v924, %v923
          %v949 = vpack.c.bf16 %v926, %v925
          %v950 = vpack.c.bf16 %v928, %v927
          %v951 = vpack.c.bf16 %v930, %v929
          %v952 = vpack.c.bf16 %v932, %v931
          %v953 = vpack.c.bf16 %v934, %v933
          %v954 = vpack.c.bf16 %v936, %v935
          %v955 = vpack.c.bf16 %v938, %v937
          %v956 = vpack.c.bf16 %v940, %v939
          %v973 = vunpack.c.l.b16 %v941
          %v974 = vunpack.c.h.b16 %v941
          %v975 = vunpack.c.l.b16 %v942
          %v976 = vunpack.c.h.b16 %v942
          %v977 = vunpack.c.l.b16 %v943
          %v978 = vunpack.c.h.b16 %v943
          %v979 = vunpack.c.l.b16 %v944
          %v980 = vunpack.c.h.b16 %v944
          %v981 = vunpack.c.l.b16 %v945
          %v982 = vunpack.c.h.b16 %v945
          %v983 = vunpack.c.l.b16 %v946
          %v984 = vunpack.c.h.b16 %v946
          %v985 = vunpack.c.l.b16 %v947
          %v986 = vunpack.c.h.b16 %v947
          %v987 = vunpack.c.l.b16 %v948
          %v988 = vunpack.c.h.b16 %v948
          %v989 = vunpack.c.l.b16 %v949
          %v990 = vunpack.c.h.b16 %v949
          %v991 = vunpack.c.l.b16 %v950
          %v992 = vunpack.c.h.b16 %v950
          %v993 = vunpack.c.l.b16 %v951
          %v994 = vunpack.c.h.b16 %v951
          %v995 = vunpack.c.l.b16 %v952
          %v996 = vunpack.c.h.b16 %v952
          %v997 = vunpack.c.l.b16 %v953
          %v998 = vunpack.c.h.b16 %v953
          %v999 = vunpack.c.l.b16 %v954
          %v1000 = vunpack.c.h.b16 %v954
          %v1001 = vunpack.c.l.b16 %v955
          %v1002 = vunpack.c.h.b16 %v955
          %v1003 = vunpack.c.l.b16 %v956
          %v1004 = vunpack.c.h.b16 %v956
          %v1005 = vpack.c.b16 %v973, %v973
          %v1006 = vpack.c.b16 %v974, %v974
          %v1007 = vpack.c.b16 %v975, %v975
          %v1008 = vpack.c.b16 %v976, %v976
          %v1009 = vpack.c.b16 %v977, %v977
          %v1010 = vpack.c.b16 %v978, %v978
          %v1011 = vpack.c.b16 %v979, %v979
          %v1012 = vpack.c.b16 %v980, %v980
          %v1013 = vpack.c.b16 %v981, %v981
          %v1014 = vpack.c.b16 %v982, %v982
          %v1015 = vpack.c.b16 %v983, %v983
          %v1016 = vpack.c.b16 %v984, %v984
          %v1017 = vpack.c.b16 %v985, %v985
          %v1018 = vpack.c.b16 %v986, %v986
          %v1019 = vpack.c.b16 %v987, %v987
          %v1020 = vpack.c.b16 %v988, %v988
          %v1021 = vpack.c.b16 %v989, %v989
          %v1022 = vpack.c.b16 %v990, %v990
          %v1023 = vpack.c.b16 %v991, %v991
          %v1024 = vpack.c.b16 %v992, %v992
          %v1025 = vpack.c.b16 %v993, %v993
          %v1026 = vpack.c.b16 %v994, %v994
          %v1027 = vpack.c.b16 %v995, %v995
          %v1028 = vpack.c.b16 %v996, %v996
          %v1029 = vpack.c.b16 %v997, %v997
          %v1030 = vpack.c.b16 %v998, %v998
          %v1031 = vpack.c.b16 %v999, %v999
          %v1032 = vpack.c.b16 %v1000, %v1000
          %v1033 = vpack.c.b16 %v1001, %v1001
          %v1034 = vpack.c.b16 %v1002, %v1002
          %v1035 = vpack.c.b16 %v1003, %v1003
          %v1036 = vpack.c.b16 %v1004, %v1004
          %1069 = vst [vmem:[%s300] sm:$0xf] %v1005
          %1070 = vst [vmem:[%s300 + $0x4] sm:$0xf] %v1006
          %1071 = vst [vmem:[%s300 + $0x8] sm:$0xf] %v1007
          %1072 = vst [vmem:[%s300 + $0xc] sm:$0xf] %v1008
          %1073 = vst [vmem:[%s300 + $0x10] sm:$0xf] %v1009
          %1074 = vst [vmem:[%s300 + $0x14] sm:$0xf] %v1010
          %1075 = vst [vmem:[%s300 + $0x18] sm:$0xf] %v1011
          %1076 = vst [vmem:[%s300 + $0x1c] sm:$0xf] %v1012
          %1077 = vst [vmem:[%s300 + $0x20] sm:$0xf] %v1013
          %1078 = vst [vmem:[%s300 + $0x24] sm:$0xf] %v1014
          %1079 = vst [vmem:[%s300 + $0x28] sm:$0xf] %v1015
          %1080 = vst [vmem:[%s300 + $0x2c] sm:$0xf] %v1016
          %1081 = vst [vmem:[%s300 + $0x30] sm:$0xf] %v1017
          %1082 = vst [vmem:[%s300 + $0x34] sm:$0xf] %v1018
          %1083 = vst [vmem:[%s300 + $0x38] sm:$0xf] %v1019
          %1084 = vst [vmem:[%s300 + $0x3c] sm:$0xf] %v1020
          %1085 = vst [vmem:[%s300 + $0x40] sm:$0xf] %v1021
          %1086 = vst [vmem:[%s300 + $0x44] sm:$0xf] %v1022
          %1087 = vst [vmem:[%s300 + $0x48] sm:$0xf] %v1023
          %1088 = vst [vmem:[%s300 + $0x4c] sm:$0xf] %v1024
          %1089 = vst [vmem:[%s300 + $0x50] sm:$0xf] %v1025
          %1090 = vst [vmem:[%s300 + $0x54] sm:$0xf] %v1026
          %1091 = vst [vmem:[%s300 + $0x58] sm:$0xf] %v1027
          %1092 = vst [vmem:[%s300 + $0x5c] sm:$0xf] %v1028
          %1093 = vst [vmem:[%s300 + $0x60] sm:$0xf] %v1029
          %1094 = vst [vmem:[%s300 + $0x64] sm:$0xf] %v1030
          %1095 = vst [vmem:[%s300 + $0x68] sm:$0xf] %v1031
          %1096 = vst [vmem:[%s300 + $0x6c] sm:$0xf] %v1032
          %1097 = vst [vmem:[%s300 + $0x70] sm:$0xf] %v1033
          %1098 = vst [vmem:[%s300 + $0x74] sm:$0xf] %v1034
          %1099 = vst [vmem:[%s300 + $0x78] sm:$0xf] %v1035
          %1100 = vst [vmem:[%s300 + $0x7c] sm:$0xf] %v1036
        $region52: #{tpu_custom_call.1} parent=35 // pred_fallthru
          _
        %s1101 = sand.u32 %s170, 1
        %s1102 = scalar_lea.sflag [#allocation5], %s1101
        %s1103 = sand.u32 %s170, 1
        %s1104 = smul.addr %s1103, 128
        %s1105 = scalar_lea.vmem [#allocation8], %s1104
        // Predicated region
        $region53: #{tpu_custom_call.1} parent=35 // pred_check
          %p1106 = pneg %p180
        $region54: #{tpu_custom_call.1} parent=35 // pred_check_branch
          %1108 = sbr.rel (%p1106) target = $region56
        $region55: #{tpu_custom_call.1} parent=35 // pred_region
          %s1109 = smul.u32 32, %s29
          %s1111 = ssub.s32 2048, 2048
          %1112 = vsyncadd %s1102, %s1111
          %s1113 = sadd.s32 %s30, %s1109
          %s1114 = smul.addr %s28, 32
          %s1115 = sadd.s32 %s1113, %s1114
          %s1116 = smul.addr %s1115, 64
          %s1117 = scalar_lea.hbm %s4, %s1116
          %s1118 = sshll.u32 %s1105, 4
          %s1119 = int_to_ptr.vmem [resolvable:$true] %s1118
          %1124 = dma.vmem_to_hbm [thread:$0]  %s1119, 2048, %s1117, %s1102, 64, 64, 4
        $region56: #{tpu_custom_call.1} parent=35 // pred_fallthru
          _
      $region36: #{tpu_custom_call.1} parent=5 // pred_fallthru
        _
      %p1125 = scmp.le.s32.totalorder 2, %s17
      // Predicated region
      $region57: #{tpu_custom_call.1} parent=5 // pred_check
        %p1126 = pneg %p1125
      $region58: #{tpu_custom_call.1} parent=5 // pred_check_branch
        %1128 = sbr.rel (%p1126) target = $region60
      $region59: #{tpu_custom_call.1} parent=5 // pred_region
        %s1129 = ssub.s32 %s17, 2
        // Predicated region
        $region61: #{tpu_custom_call.1} parent=59 // pred_check
          %p1130 = pneg %p186
        $region62: #{tpu_custom_call.1} parent=59 // pred_check_branch
          %1132 = sbr.rel (%p1130) target = $region64
        $region63: #{tpu_custom_call.1} parent=59 // pred_region
          %s1133 = sand.u32 %s171, 1
          %s1134 = scalar_lea.sflag [#allocation5], %s1133
          %s1135 = sand.u32 %s171, 1
          %s1136 = smul.addr %s1135, 128
          %s1137 = scalar_lea.vmem [#allocation8], %s1136
          %1138 = dma.done %s1134, 2048
        $region64: #{tpu_custom_call.1} parent=59 // pred_fallthru
          _
      $region60: #{tpu_custom_call.1} parent=5 // pred_fallthru
        _
    $region6: #{tpu_custom_call.1} parent=1 // loop_footer
      %s21 = sadd.s32 1, %s17
    $region7: #{tpu_custom_call.1} parent=1 // loop_footer_branch
      %16 = sbr.rel target = $region3
    $region8: #{tpu_custom_call.1} parent=1 // loop_exit
      _
    %1139 = vsyncpa [#allocation4], 1
    %s1140 = scalar_lea.sflag [#allocation4], 1
    %1141 = vsyncpa %s1140, 1
    %1142 = vsyncpa [#allocation7], 1
    %1143 = vsyncpa [#allocation5], 1
    %s1144 = scalar_lea.sflag [#allocation5], 1
    %1145 = vsyncpa %s1144, 1

</llo_original>
